<compile_context>
chip_gen: v5e
topology: v5e:2x2
jax: 0.10.0
libtpu: 0.0.40
codegen_flags: <defaults>
</compile_context>

<pallas_src>
import numpy as np
import jax
import jax.numpy as jnp
from jax.experimental import pallas as pl
from jax.experimental.pallas import tpu as pltpu


_VMEM_LIMIT = 32 * 1024 * 1024     # explicit scoped-VMEM cap (v5e default is 16 MiB)
_FOURIER_TILE_CAP = 2048           # ~9.4 MiB double-buffered across 5 streams
_MOMENTS_TILE_CAP = 4096           # ~8.4 MiB double-buffered (2 f32 input streams)


# ----------------------------------------------------------------------------
# tiling helper
# ----------------------------------------------------------------------------
def _pick_tile_rows(R, cap, multiple=8):
    """Largest row tile <= cap that divides R.

    Full extent (R <= cap) is always legal.  Otherwise prefer divisors that
    are a multiple of `multiple` (16 is safe for bf16 sublane packing, 8 for
    f32).  Power-of-two grids (the boxsize auto-adjustment guarantees these)
    always find a clean divisor.
    """
    if R <= cap:
        return R
    start = cap - (cap % multiple)
    for t in range(start, 0, -multiple):
        if R % t == 0:
            return t
    # TODO(synk): pad R to a tile multiple and mask the tail instead of a
    # single full-extent block for awkwardly factored R.
    return R


# ----------------------------------------------------------------------------
# Pallas kernel 1: Fourier-domain wavelet filtering
#   wtx_hat[c] = psi_hat[c] * x_hat     (psi_hat real bf16, x_hat complex f32)
# ----------------------------------------------------------------------------
def _fourier_filter_kernel(w_ref, xr_ref, xi_ref, ore_ref, oim_ref):
    w = w_ref[...].astype(jnp.float32)   # (1, TR, 128) bf16 filter tile -> f32
    xr = xr_ref[...]                     # (TR, 128)    Re(x_hat) tile
    xi = xi_ref[...]                     # (TR, 128)    Im(x_hat) tile
    ore_ref[...] = w * xr                # broadcast -> (1, TR, 128)
    oim_ref[...] = w * xi


def fourier_filter(filters, xhat_re, xhat_im, *, tile_rows=None):
    """filters: (C, R, 128) bf16/f32, xhat_re/im: (R, 128) f32 -> two (C, R, 128) f32."""
    C, R, LN = filters.shape
    assert LN == 128
    if tile_rows is None:
        tile_rows = _pick_tile_rows(R, cap=_FOURIER_TILE_CAP, multiple=16)
    assert R % tile_rows == 0

    spec_w = pl.BlockSpec((1, tile_rows, LN), lambda r, c: (c, r, 0))
    spec_x = pl.BlockSpec((tile_rows, LN), lambda r, c: (r, 0))
    spec_o = pl.BlockSpec((1, tile_rows, LN), lambda r, c: (c, r, 0))

    out_re, out_im = pl.pallas_call(
        _fourier_filter_kernel,
        out_shape=(jax.ShapeDtypeStruct((C, R, LN), jnp.float32),
                   jax.ShapeDtypeStruct((C, R, LN), jnp.float32)),
        grid_spec=pltpu.PrefetchScalarGridSpec(
            num_scalar_prefetch=0,
            # Channel axis innermost: the x_hat block index (r, 0) is unchanged
            # across consecutive steps, so x_hat is fetched once per row-tile
            # instead of once per (row-tile, channel).
            grid=(R // tile_rows, C),
            in_specs=[spec_w, spec_x, spec_x],
            out_specs=(spec_o, spec_o),
        ),
        compiler_params=pltpu.CompilerParams(
            dimension_semantics=("parallel", "parallel"),
            vmem_limit_bytes=_VMEM_LIMIT),
    )(filters, xhat_re, xhat_im)
    return out_re, out_im


# ----------------------------------------------------------------------------
# Pallas kernel 2: modulus + moments + spatial-sum reduction
#   acc[c, m, :] = sum_over_rows( |re + i*im| ** moments[m] )   (per lane)
#   acc[c, M, :] = count of valid (non-NaN) samples   (only when nan_safe)
# Finalisation (lane reduce + divide) happens in JAX on the tiny accumulator.
# ----------------------------------------------------------------------------
def _make_moments_kernel(moments, complex_input, nan_safe):
    n_m = len(moments)
    need_amp = any(p != 2.0 for p in moments)

    def kernel(*refs):
        if complex_input:
            re_ref, im_ref, out_ref = refs
        else:
            re_ref, out_ref = refs
        r = pl.program_id(1)

        @pl.when(r == 0)
        def _init():
            out_ref[...] = jnp.zeros_like(out_ref)

        re = re_ref[...].astype(jnp.float32)                  # (1, TR, 128)
        im = im_ref[...].astype(jnp.float32) if complex_input else None

        if nan_safe:
            # One select per input stream (on the base values) rather than one
            # per moment: 0^p stays 0 for p > 0 downstream.
            if complex_input:
                valid = jnp.logical_not(
                    jnp.logical_or(jnp.isnan(re), jnp.isnan(im)))
                re = jnp.where(valid, re, 0.0)
                im = jnp.where(valid, im, 0.0)
            else:
                valid = jnp.logical_not(jnp.isnan(re))
                re = jnp.where(valid, re, 0.0)

        sq = re * re + im * im if complex_input else re * re  # |.|^2
        amp = jnp.sqrt(sq) if need_amp else None              # |.| (EUP)

        # Accumulate per-lane partial sums locally, single read-modify-write of
        # the resident (1, n_rows, 128) output block per grid step.
        parts = []
        for p in moments:
            if p == 2.0:
                v = sq                                         # no sqrt needed
            elif p == 1.0:
                v = amp
            elif p == 0.5:
                v = jnp.sqrt(amp)
            else:                                              # generic (p > 0)
                v = jnp.power(amp, jnp.float32(p))
            parts.append(jnp.sum(v, axis=1, keepdims=True))    # (1, 1, 128)
        if nan_safe:
            parts.append(jnp.sum(valid.astype(jnp.float32), axis=1,
                                 keepdims=True))
        out_ref[...] += jnp.concatenate(parts, axis=1)

    return kernel


def moments_reduce(re, im, moments, *, nan_safe, tile_rows=None):
    """re: (C, R, 128), im: (C, R, 128) or None.

    Returns the raw accumulator (C, M [+1], 128): per-lane sums of |.|^p (and
    valid counts when nan_safe).  Finalise in JAX.
    """
    C, R, LN = re.shape
    assert LN == 128
    if tile_rows is None:
        tile_rows = _pick_tile_rows(R, cap=_MOMENTS_TILE_CAP, multiple=8)
    assert R % tile_rows == 0
    n_m = len(moments)
    complex_input = im is not None
    n_rows = n_m + (1 if nan_safe else 0)

    kernel = _make_moments_kernel(tuple(float(p) for p in moments),
                                  complex_input, nan_safe)
    spec_in = pl.BlockSpec((1, tile_rows, LN), lambda c, r: (c, r, 0))
    in_specs = [spec_in, spec_in] if complex_input else [spec_in]
    args = (re, im) if complex_input else (re,)

    acc = pl.pallas_call(
        kernel,
        out_shape=jax.ShapeDtypeStruct((C, n_rows, 128), jnp.float32),
        grid_spec=pltpu.PrefetchScalarGridSpec(
            num_scalar_prefetch=0,
            grid=(C, R // tile_rows),
            in_specs=in_specs,
            out_specs=pl.BlockSpec((1, n_rows, 128), lambda c, r: (c, 0, 0)),
        ),
        compiler_params=pltpu.CompilerParams(
            dimension_semantics=("parallel", "arbitrary"),
            vmem_limit_bytes=_VMEM_LIMIT),
    )(*args)
    return acc                                                # (C, n_rows, 128)


# ----------------------------------------------------------------------------
# Deterministic synthetic wavelet bank (Lanusse/Eickenberg-style, in Fourier)
# ----------------------------------------------------------------------------
def build_wavelet_bank(grid_size, J, Q, kc, angular_width, los, grid_steps,
                       nb_orientations):
    D, H, W = grid_size
    kx = 2 * np.pi * np.fft.fftfreq(D, d=grid_steps[0])
    ky = 2 * np.pi * np.fft.fftfreq(H, d=grid_steps[1])
    kz = 2 * np.pi * np.fft.fftfreq(W, d=grid_steps[2])
    KX, KY, KZ = np.meshgrid(kx, ky, kz, indexing="ij")
    kmag = np.sqrt(KX ** 2 + KY ** 2 + KZ ** 2)
    eps = 1e-12

    los = np.asarray(los, dtype=float)
    los = los / (np.linalg.norm(los) + eps)
    helper = np.array([1.0, 0.0, 0.0]) if abs(los[0]) < 0.9 else np.array([0.0, 1.0, 0.0])
    e2 = np.cross(los, helper)
    e2 = e2 / (np.linalg.norm(e2) + eps)

    L = nb_orientations
    thetas = np.pi * np.arange(L) / max(L, 1)
    orientations = [np.cos(t) * los + np.sin(t) * e2 for t in thetas]

    Jeff = J * Q
    filters = np.zeros((Jeff * L, D, H, W), dtype=np.float32)
    c = 0
    for j in range(Jeff):
        kj = kc / (2.0 ** (j / Q))
        u = kmag / kj
        radial = (u ** 3) * np.exp(-1.5 * u ** 2)             # band-pass bump
        radial = radial / (radial.max() + eps)
        for u_l in orientations:
            if angular_width is None:
                ang = np.ones_like(kmag)
            else:
                cosang = (KX * u_l[0] + KY * u_l[1] + KZ * u_l[2]) / (kmag + eps)
                ang = np.exp(-(1.0 - cosang ** 2) / (2.0 * angular_width ** 2))
            filters[c] = (radial * ang).astype(np.float32)
            c += 1
    return jnp.asarray(filters)                               # (C, D, H, W) f32


# ----------------------------------------------------------------------------
# Module wrapper
# ----------------------------------------------------------------------------
class GalaxyCatalogScatteringOpPallas:
    def __init__(self, J, box_size=(1000.0, 1000.0, 1000.0),
                 box_center=(0.0, 0.0, 0.0), los_auto_detection=True,
                 kmax=0.5, boxsize_powoftwomult=1, boxsize_auto_adjustment=True,
                 grid_size=(64, 64, 64), grid_steps=(1.0, 1.0, 1.0),
                 los=(0.0, 0.0, 1.0), Q=1, kc=np.pi, angular_width=None,
                 moments=(0.5, 1.0, 2.0), scattering=False,
                 filter_dtype=jnp.bfloat16, s1_input_dtype=jnp.float32,
                 channel_chunk=None):
        self.box_size = np.array(box_size, dtype=float)
        self.box_center = np.array(box_center, dtype=float)
        if los_auto_detection:
            n = np.linalg.norm(self.box_center)
            if n != 0.0:
                los = tuple(self.box_center / n)
        if boxsize_auto_adjustment:
            scale_min = 2 * np.pi / kmax
            for i in range(3):
                q = self.box_size[i] // (scale_min / 2)
                for jj in range(boxsize_powoftwomult + 1):
                    if q % 2 ** jj != 0:
                        q = (q // 2 ** jj + 1) * 2 ** jj
                self.box_size[i] = q * scale_min / 2
            grid_size = tuple(int(np.rint(2 * self.box_size[i] / scale_min))
                              for i in range(3))
            grid_steps = (scale_min / 2,) * 3
        self.grid_size = tuple(int(g) for g in grid_size)
        self.grid_steps = tuple(float(g) for g in grid_steps)
        self.J, self.Q, self.kc = J, Q, float(kc)
        self.moments = tuple(float(m) for m in moments)
        self.scattering = scattering
        self.s1_input_dtype = s1_input_dtype
        self.channel_chunk = channel_chunk
        # Deterministic synthetic choice of orientation count.
        self.nb_orientations = 1 if angular_width is None else 2
        bank = build_wavelet_bank(
            self.grid_size, J, Q, self.kc, angular_width, los,
            self.grid_steps, self.nb_orientations)
        # bf16 filter storage halves the filter HBM stream; kernel upcasts.
        self.filters_hat = bank.astype(filter_dtype)          # (C, D, H, W)
        self._forward = jax.jit(self._forward_impl)

    # ---- jitted forward: FFT / Pallas filter / IFFT / Pallas reductions ----
    def _forward_impl(self, x, filters_hat):
        D, H, W = self.grid_size
        S = D * H * W
        assert S % 128 == 0, "spatial volume must be a multiple of 128"
        R = S // 128
        M = len(self.moments)
        Jeff = self.J * self.Q
        L = self.nb_orientations
        C = Jeff * L

        x = x.astype(jnp.float32)

        # ---- S0 = nanmean(|x|^p): real-only, nan-safe reduction. Split the
        # row axis into 2 pseudo-channels so both v7x TensorCores get work. ----
        split = 2 if R % 2 == 0 else 1
        acc0 = moments_reduce(x.reshape(split, R // split, 128), None,
                              self.moments, nan_safe=True)    # (split, M+1, 128)
        s0 = jnp.sum(acc0[:, :M, :], axis=(0, 2)) / jnp.sum(acc0[:, M, :])

        # ---- wavelet transform: FFT (XLA) -> Pallas Fourier multiply -> IFFT ----
        xhat = jnp.fft.fftn(x)
        xr = jnp.real(xhat).reshape(R, 128)
        xi = jnp.imag(xhat).reshape(R, 128)
        filt = filters_hat.reshape(C, R, 128)

        # Optional channel chunking: bounds peak HBM working set and lets XLA
        # overlap chunk i's IFFT with chunk i-1's moments reduction.
        chunk = self.channel_chunk if self.channel_chunk else C
        accs = []
        for c0 in range(0, C, chunk):
            fc = filt[c0:c0 + chunk]
            cc = fc.shape[0]
            wre_hat, wim_hat = fourier_filter(fc, xr, xi)
            # TODO(synk): lax.complex repack kept -- no complex64 bitcast in JAX.
            wt_hat = jax.lax.complex(wre_hat, wim_hat).reshape(cc, D, H, W)
            wtx = jnp.fft.ifftn(wt_hat, axes=(-3, -2, -1))    # complex64
            wr = jnp.real(wtx).astype(self.s1_input_dtype).reshape(cc, R, 128)
            wi = jnp.imag(wtx).astype(self.s1_input_dtype).reshape(cc, R, 128)
            # S1: nan masking is vacuous after FFT->IFFT -> nan-unsafe fast path.
            accs.append(moments_reduce(wr, wi, self.moments, nan_safe=False))
        acc1 = jnp.concatenate(accs, axis=0) if len(accs) > 1 else accs[0]

        s1 = jnp.sum(acc1, axis=-1) / jnp.float32(S)          # (C, M)
        s1 = s1.T.reshape(M, Jeff, L)                         # (M, Jeff, L)
        return s0, s1

    def __call__(self, x):
        """x: real f32 mesh field of shape self.grid_size.
        Returns (S0, S1):  S0 (M,),  S1 (M, J*Q, L)."""
        return self._forward(x, self.filters_hat)


# ----------------------------------------------------------------------------
# Pure-JAX reference (for correctness check); uses the same (bf16) filter bank
# so the comparison isolates kernel correctness from filter quantization.
# ----------------------------------------------------------------------------
def reference_forward(op, x):
    M = len(op.moments)
    Jeff, L = op.J * op.Q, op.nb_orientations
    filt = op.filters_hat.astype(jnp.float32)
    ax = jnp.abs(x)
    s0 = jnp.stack([jnp.mean(ax ** p) for p in op.moments])
    xhat = jnp.fft.fftn(x)
    wtx = jnp.fft.ifftn(filt * xhat[None], axes=(-3, -2, -1))
    awtx = jnp.abs(wtx)
    s1 = jnp.stack([jnp.mean(awtx ** p, axis=(-3, -2, -1)) for p in op.moments])
    return s0, s1.reshape(M, Jeff, L)


if __name__ == "__main__":
    # Small deterministic test: 16^3 mesh, J=2 octaves, Q=1, 2 orientations.
    op = GalaxyCatalogScatteringOpPallas(
        J=2, Q=1, kc=np.pi, angular_width=0.6,
        boxsize_auto_adjustment=False, los_auto_detection=False,
        grid_size=(16, 16, 16), grid_steps=(1.0, 1.0, 1.0),
        moments=(0.5, 1.0, 2.0), scattering=False)

    key = jax.random.PRNGKey(0)
    x = jax.random.normal(key, (16, 16, 16), dtype=jnp.float32)

    s0, s1 = op(x)
    s0 = jax.block_until_ready(s0)
    s1 = jax.block_until_ready(s1)

    s0_ref, s1_ref = reference_forward(op, x)
    # Both paths are fully f32 now; only reduction-order differences remain.
    np.testing.assert_allclose(np.asarray(s0), np.asarray(s0_ref),
                               rtol=1e-3, atol=1e-6)
    np.testing.assert_allclose(np.asarray(s1), np.asarray(s1_ref),
                               rtol=1e-3, atol=1e-6)

    print("KERNEL_OK")
</pallas_src>

<mosaic_0001>
module attributes {stable_mosaic.version = 11 : i64} {
  func.func @_fourier_filter_kernel(%arg0: i32, %arg1: i32, %arg2: memref<1x32x128xbf16, #tpu.memory_space<vmem>>, %arg3: memref<32x128xf32, #tpu.memory_space<vmem>>, %arg4: memref<32x128xf32, #tpu.memory_space<vmem>>, %arg5: memref<1x32x128xf32, #tpu.memory_space<vmem>>, %arg6: memref<1x32x128xf32, #tpu.memory_space<vmem>>) attributes {dimension_semantics = [#tpu.dimension_semantics<parallel>, #tpu.dimension_semantics<parallel>], iteration_bounds = array<i64: 1, 4>, scalar_prefetch = 0 : i64, scratch_operands = 0 : i64, tpu.core_type = #tpu.core_type<tc>, window_params = [{transform_indices = @transform_0, window_bounds = array<i64: 1, 32, 128>}, {transform_indices = @transform_1, window_bounds = array<i64: 32, 128>}, {transform_indices = @transform_2, window_bounds = array<i64: 32, 128>}, {transform_indices = @transform_3, window_bounds = array<i64: 1, 32, 128>}, {transform_indices = @transform_4, window_bounds = array<i64: 1, 32, 128>}]} {
    %c0 = arith.constant 0 : index
    %c0_0 = arith.constant 0 : index
    %c0_1 = arith.constant 0 : index
    %0 = vector.load %arg2[%c0, %c0_0, %c0_1] : memref<1x32x128xbf16, #tpu.memory_space<vmem>>, vector<1x32x128xbf16>
    %1 = arith.extf %0 : vector<1x32x128xbf16> to vector<1x32x128xf32>
    %c0_2 = arith.constant 0 : index
    %c0_3 = arith.constant 0 : index
    %2 = vector.load %arg3[%c0_2, %c0_3] : memref<32x128xf32, #tpu.memory_space<vmem>>, vector<32x128xf32>
    %c0_4 = arith.constant 0 : index
    %c0_5 = arith.constant 0 : index
    %3 = vector.load %arg4[%c0_4, %c0_5] : memref<32x128xf32, #tpu.memory_space<vmem>>, vector<32x128xf32>
    %4 = vector.shape_cast %2 : vector<32x128xf32> to vector<1x32x128xf32>
    %5 = arith.mulf %1, %4 : vector<1x32x128xf32>
    %c0_6 = arith.constant 0 : index
    %c0_7 = arith.constant 0 : index
    %c0_8 = arith.constant 0 : index
    %6 = vector.load %arg5[%c0_6, %c0_7, %c0_8] : memref<1x32x128xf32, #tpu.memory_space<vmem>>, vector<1x32x128xf32>
    tpu.vector_store %arg5[%c0_6, %c0_7, %c0_8], %5 {strides = array<i32>} : memref<1x32x128xf32, #tpu.memory_space<vmem>>, vector<1x32x128xf32>,
    %7 = vector.shape_cast %3 : vector<32x128xf32> to vector<1x32x128xf32>
    %8 = arith.mulf %1, %7 : vector<1x32x128xf32>
    %c0_9 = arith.constant 0 : index
    %c0_10 = arith.constant 0 : index
    %c0_11 = arith.constant 0 : index
    %9 = vector.load %arg6[%c0_9, %c0_10, %c0_11] : memref<1x32x128xf32, #tpu.memory_space<vmem>>, vector<1x32x128xf32>
    tpu.vector_store %arg6[%c0_9, %c0_10, %c0_11], %8 {strides = array<i32>} : memref<1x32x128xf32, #tpu.memory_space<vmem>>, vector<1x32x128xf32>,
    return
  }
  func.func @transform_0(%arg0: i32, %arg1: i32) -> (i32, i32, i32) {
    %c0_i32 = arith.constant 0 : i32
    %c0_i32_0 = arith.constant 0 : i32
    return %arg1, %arg0, %c0_i32 : i32, i32, i32
  }
  func.func @transform_1(%arg0: i32, %arg1: i32) -> (i32, i32) {
    %c0_i32 = arith.constant 0 : i32
    %c0_i32_0 = arith.constant 0 : i32
    return %arg0, %c0_i32 : i32, i32
  }
  func.func @transform_2(%arg0: i32, %arg1: i32) -> (i32, i32) {
    %c0_i32 = arith.constant 0 : i32
    %c0_i32_0 = arith.constant 0 : i32
    return %arg0, %c0_i32 : i32, i32
  }
  func.func @transform_3(%arg0: i32, %arg1: i32) -> (i32, i32, i32) {
    %c0_i32 = arith.constant 0 : i32
    %c0_i32_0 = arith.constant 0 : i32
    return %arg1, %arg0, %c0_i32 : i32, i32, i32
  }
  func.func @transform_4(%arg0: i32, %arg1: i32) -> (i32, i32, i32) {
    %c0_i32 = arith.constant 0 : i32
    %c0_i32_0 = arith.constant 0 : i32
    return %arg1, %arg0, %c0_i32 : i32, i32, i32
  }
}

module attributes {stable_mosaic.version = 11 : i64} {
  func.func @kernel(%arg0: i32, %arg1: i32, %arg2: memref<1x32x128xf32, #tpu.memory_space<vmem>>, %arg3: memref<1x32x128xf32, #tpu.memory_space<vmem>>, %arg4: memref<1x3x128xf32, #tpu.memory_space<vmem>>) attributes {dimension_semantics = [#tpu.dimension_semantics<parallel>, #tpu.dimension_semantics<arbitrary>], iteration_bounds = array<i64: 4, 1>, scalar_prefetch = 0 : i64, scratch_operands = 0 : i64, tpu.core_type = #tpu.core_type<tc>, window_params = [{transform_indices = @transform_0, window_bounds = array<i64: 1, 32, 128>}, {transform_indices = @transform_1, window_bounds = array<i64: 1, 32, 128>}, {transform_indices = @transform_2, window_bounds = array<i64: 1, 3, 128>}]} {
    %c0_i32 = arith.constant 0 : i32
    %0 = arith.cmpi eq, %arg1, %c0_i32 : i32
    %1 = arith.extui %0 : i1 to i32
    %c0_i32_0 = arith.constant 0 : i32
    %2 = arith.cmpi ne, %1, %c0_i32_0 : i32
    scf.if %2 {
      %cst_14 = arith.constant 0.000000e+00 : f32
      %20 = vector.broadcast %cst_14 : f32 to vector<1x3x128xf32>
      %c0_15 = arith.constant 0 : index
      %c0_16 = arith.constant 0 : index
      %c0_17 = arith.constant 0 : index
      %21 = vector.load %arg4[%c0_15, %c0_16, %c0_17] : memref<1x3x128xf32, #tpu.memory_space<vmem>>, vector<1x3x128xf32>
      tpu.vector_store %arg4[%c0_15, %c0_16, %c0_17], %20 {strides = array<i32>} : memref<1x3x128xf32, #tpu.memory_space<vmem>>, vector<1x3x128xf32>,
    } else {
    }
    %c0 = arith.constant 0 : index
    %c0_1 = arith.constant 0 : index
    %c0_2 = arith.constant 0 : index
    %3 = vector.load %arg2[%c0, %c0_1, %c0_2] : memref<1x32x128xf32, #tpu.memory_space<vmem>>, vector<1x32x128xf32>
    %c0_3 = arith.constant 0 : index
    %c0_4 = arith.constant 0 : index
    %c0_5 = arith.constant 0 : index
    %4 = vector.load %arg3[%c0_3, %c0_4, %c0_5] : memref<1x32x128xf32, #tpu.memory_space<vmem>>, vector<1x32x128xf32>
    %5 = arith.mulf %3, %3 : vector<1x32x128xf32>
    %6 = arith.mulf %4, %4 : vector<1x32x128xf32>
    %7 = arith.addf %5, %6 : vector<1x32x128xf32>
    %8 = math.sqrt %7 : vector<1x32x128xf32>
    %9 = math.sqrt %8 : vector<1x32x128xf32>
    %cst = arith.constant dense<0.000000e+00> : vector<1x128xf32>
    %10 = vector.multi_reduction <add>, %9, %cst [1] : vector<1x32x128xf32> to vector<1x128xf32>
    %11 = vector.shape_cast %10 : vector<1x128xf32> to vector<1x1x128xf32>
    %cst_6 = arith.constant dense<0.000000e+00> : vector<1x128xf32>
    %12 = vector.multi_reduction <add>, %8, %cst_6 [1] : vector<1x32x128xf32> to vector<1x128xf32>
    %13 = vector.shape_cast %12 : vector<1x128xf32> to vector<1x1x128xf32>
    %cst_7 = arith.constant dense<0.000000e+00> : vector<1x128xf32>
    %14 = vector.multi_reduction <add>, %7, %cst_7 [1] : vector<1x32x128xf32> to vector<1x128xf32>
    %15 = vector.shape_cast %14 : vector<1x128xf32> to vector<1x1x128xf32>
    %c0_8 = arith.constant 0 : index
    %c0_9 = arith.constant 0 : index
    %c0_10 = arith.constant 0 : index
    %16 = vector.load %arg4[%c0_8, %c0_9, %c0_10] : memref<1x3x128xf32, #tpu.memory_space<vmem>>, vector<1x3x128xf32>
    %17 = tpu.concatenate %11, %13, %15 in 1 : vector<1x1x128xf32>, vector<1x1x128xf32>, vector<1x1x128xf32> -> vector<1x3x128xf32>
    %18 = arith.addf %16, %17 : vector<1x3x128xf32>
    %c0_11 = arith.constant 0 : index
    %c0_12 = arith.constant 0 : index
    %c0_13 = arith.constant 0 : index
    %19 = vector.load %arg4[%c0_11, %c0_12, %c0_13] : memref<1x3x128xf32, #tpu.memory_space<vmem>>, vector<1x3x128xf32>
    tpu.vector_store %arg4[%c0_11, %c0_12, %c0_13], %18 {strides = array<i32>} : memref<1x3x128xf32, #tpu.memory_space<vmem>>, vector<1x3x128xf32>,
    return
  }
  func.func @transform_0(%arg0: i32, %arg1: i32) -> (i32, i32, i32) {
    %c0_i32 = arith.constant 0 : i32
    %c0_i32_0 = arith.constant 0 : i32
    return %arg0, %arg1, %c0_i32 : i32, i32, i32
  }
  func.func @transform_1(%arg0: i32, %arg1: i32) -> (i32, i32, i32) {
    %c0_i32 = arith.constant 0 : i32
    %c0_i32_0 = arith.constant 0 : i32
    return %arg0, %arg1, %c0_i32 : i32, i32, i32
  }
  func.func @transform_2(%arg0: i32, %arg1: i32) -> (i32, i32, i32) {
    %c0_i32 = arith.constant 0 : i32
    %c0_i32_0 = arith.constant 0 : i32
    %c0_i32_1 = arith.constant 0 : i32
    return %arg0, %c0_i32, %c0_i32_0 : i32, i32, i32
  }
}

module attributes {stable_mosaic.version = 11 : i64} {
  func.func @kernel(%arg0: i32, %arg1: i32, %arg2: memref<1x16x128xf32, #tpu.memory_space<vmem>>, %arg3: memref<1x4x128xf32, #tpu.memory_space<vmem>>) attributes {dimension_semantics = [#tpu.dimension_semantics<parallel>, #tpu.dimension_semantics<arbitrary>], iteration_bounds = array<i64: 2, 1>, scalar_prefetch = 0 : i64, scratch_operands = 0 : i64, tpu.core_type = #tpu.core_type<tc>, window_params = [{transform_indices = @transform_0, window_bounds = array<i64: 1, 16, 128>}, {transform_indices = @transform_1, window_bounds = array<i64: 1, 4, 128>}]} {
    %c0_i32 = arith.constant 0 : i32
    %0 = arith.cmpi eq, %arg1, %c0_i32 : i32
    %1 = arith.extui %0 : i1 to i32
    %c0_i32_0 = arith.constant 0 : i32
    %2 = arith.cmpi ne, %1, %c0_i32_0 : i32
    scf.if %2 {
      %cst_14 = arith.constant 0.000000e+00 : f32
      %25 = vector.broadcast %cst_14 : f32 to vector<1x4x128xf32>
      %c0_15 = arith.constant 0 : index
      %c0_16 = arith.constant 0 : index
      %c0_17 = arith.constant 0 : index
      %26 = vector.load %arg3[%c0_15, %c0_16, %c0_17] : memref<1x4x128xf32, #tpu.memory_space<vmem>>, vector<1x4x128xf32>
      tpu.vector_store %arg3[%c0_15, %c0_16, %c0_17], %25 {strides = array<i32>} : memref<1x4x128xf32, #tpu.memory_space<vmem>>, vector<1x4x128xf32>,
    } else {
    }
    %c0 = arith.constant 0 : index
    %c0_1 = arith.constant 0 : index
    %c0_2 = arith.constant 0 : index
    %3 = vector.load %arg2[%c0, %c0_1, %c0_2] : memref<1x16x128xf32, #tpu.memory_space<vmem>>, vector<1x16x128xf32>
    %4 = arith.cmpf one, %3, %3 : vector<1x16x128xf32>
    %cst = arith.constant dense<true> : vector<1x16x128xi1>
    %5 = arith.xori %4, %cst : vector<1x16x128xi1>
    %cst_3 = arith.constant 0.000000e+00 : f32
    %6 = vector.broadcast %cst_3 : f32 to vector<1x16x128xf32>
    %7 = arith.select %5, %3, %6 : vector<1x16x128xi1>, vector<1x16x128xf32>
    %8 = arith.mulf %7, %7 : vector<1x16x128xf32>
    %9 = math.sqrt %8 : vector<1x16x128xf32>
    %10 = math.sqrt %9 : vector<1x16x128xf32>
    %cst_4 = arith.constant dense<0.000000e+00> : vector<1x128xf32>
    %11 = vector.multi_reduction <add>, %10, %cst_4 [1] : vector<1x16x128xf32> to vector<1x128xf32>
    %12 = vector.shape_cast %11 : vector<1x128xf32> to vector<1x1x128xf32>
    %cst_5 = arith.constant dense<0.000000e+00> : vector<1x128xf32>
    %13 = vector.multi_reduction <add>, %9, %cst_5 [1] : vector<1x16x128xf32> to vector<1x128xf32>
    %14 = vector.shape_cast %13 : vector<1x128xf32> to vector<1x1x128xf32>
    %cst_6 = arith.constant dense<0.000000e+00> : vector<1x128xf32>
    %15 = vector.multi_reduction <add>, %8, %cst_6 [1] : vector<1x16x128xf32> to vector<1x128xf32>
    %16 = vector.shape_cast %15 : vector<1x128xf32> to vector<1x1x128xf32>
    %17 = arith.extui %5 : vector<1x16x128xi1> to vector<1x16x128xi32>
    %18 = arith.sitofp %17 : vector<1x16x128xi32> to vector<1x16x128xf32>
    %cst_7 = arith.constant dense<0.000000e+00> : vector<1x128xf32>
    %19 = vector.multi_reduction <add>, %18, %cst_7 [1] : vector<1x16x128xf32> to vector<1x128xf32>
    %20 = vector.shape_cast %19 : vector<1x128xf32> to vector<1x1x128xf32>
    %c0_8 = arith.constant 0 : index
    %c0_9 = arith.constant 0 : index
    %c0_10 = arith.constant 0 : index
    %21 = vector.load %arg3[%c0_8, %c0_9, %c0_10] : memref<1x4x128xf32, #tpu.memory_space<vmem>>, vector<1x4x128xf32>
    %22 = tpu.concatenate %12, %14, %16, %20 in 1 : vector<1x1x128xf32>, vector<1x1x128xf32>, vector<1x1x128xf32>, vector<1x1x128xf32> -> vector<1x4x128xf32>
    %23 = arith.addf %21, %22 : vector<1x4x128xf32>
    %c0_11 = arith.constant 0 : index
    %c0_12 = arith.constant 0 : index
    %c0_13 = arith.constant 0 : index
    %24 = vector.load %arg3[%c0_11, %c0_12, %c0_13] : memref<1x4x128xf32, #tpu.memory_space<vmem>>, vector<1x4x128xf32>
    tpu.vector_store %arg3[%c0_11, %c0_12, %c0_13], %23 {strides = array<i32>} : memref<1x4x128xf32, #tpu.memory_space<vmem>>, vector<1x4x128xf32>,
    return
  }
  func.func @transform_0(%arg0: i32, %arg1: i32) -> (i32, i32, i32) {
    %c0_i32 = arith.constant 0 : i32
    %c0_i32_0 = arith.constant 0 : i32
    return %arg0, %arg1, %c0_i32 : i32, i32, i32
  }
  func.func @transform_1(%arg0: i32, %arg1: i32) -> (i32, i32, i32) {
    %c0_i32 = arith.constant 0 : i32
    %c0_i32_0 = arith.constant 0 : i32
    %c0_i32_1 = arith.constant 0 : i32
    return %arg0, %c0_i32, %c0_i32_0 : i32, i32, i32
  }
}

</mosaic_0001>

<llo_original>
// kernel: _forward_impl.4
$region0: #{_forward_impl.4}
  #allocation0 [shape = 'u32[]', space=smem, size = 0x4, offset = 0x4, fixed_abs, tag = 'smem constant byte address 0x4 - core index']
  #allocation1 [shape = 'u32[72,128]{1,0:T(1,128)}', space=vmem, size = 0x9000, scoped, tag = 'internal scratch']
  %s0 = inlined_call_operand.vmem [shape: bf16[4,32,128], index: 0, kind: input, shape index: {}]
  %s1 = inlined_call_operand.vmem [shape: f32[32,128], index: 1, kind: input, shape index: {}]
  %s2 = inlined_call_operand.vmem [shape: f32[32,128], index: 2, kind: input, shape index: {}]
  %s3 = inlined_call_operand.vmem [shape: f32[4,32,128], index: 3, kind: output, shape index: {0}]
  %s4 = inlined_call_operand.vmem [shape: f32[4,32,128], index: 4, kind: output, shape index: {1}]
  %5 = xla_tuple %s3, %s4
  %s6 = sld [smem:[#allocation0]]
  $region53: #{_forward_impl.4} parent=0
    _
  %s8 = ssub.s32 1, %s6
  %s9 = scalar_select 0, %s8, %s6
  loop: start=0, step=1, limit=6
  $region2: #{_forward_impl.4} parent=0 // loop_pre_header
    _
  $region3: #{_forward_impl.4} parent=0 // loop_header
    %s11 = sphi 0, %s15
    %p12 = scmp.ge.s32.totalorder %s11, 6
    %s18 = sphi 0, %s30
    %s19 = sphi 0, %s26
    %s20 = sphi 0, %s18
    %s21 = sphi 0, %s19
    %s22 = sphi 0, %s20
    %s23 = sphi 0, %s21
    %s35 = sphi 0, %s37
    %s38 = sphi 0, %s35
    %s39 = sphi 0, %s38
    %s55 = sphi 0, %s39
    %s61 = sphi 0, %s63
    %s64 = sphi 0, %s61
    %s65 = sphi 0, %s64
    %s81 = sphi 0, %s65
    %s87 = sphi 0, %s89
    %s90 = sphi 0, %s87
    %s91 = sphi 0, %s90
    %s107 = sphi 0, %s91
    %s115 = sphi 0, %s117
    %s118 = sphi 0, %s115
    %s119 = sphi 0, %s118
    %s135 = sphi 0, %s119
    %s143 = sphi 0, %s145
    %s146 = sphi 0, %s143
    %s147 = sphi 0, %s146
    %s163 = sphi 0, %s147
  $region4: #{_forward_impl.4} parent=0 // loop_header_branch
    %14 = sbr.rel (%p12) target = $region8
  $region5: #{_forward_impl.4} parent=0 // loop_body
    %s16 = ssub.s32 %s11, 1
    %s17 = ssub.s32 %s11, 2
    %s24 = sadd.s32 1, %s19
    %p25 = scmp.ge.s32.totalorder %s24, 4
    %s26 = scalar_select %p25, 0, %s24
    %s27 = sadd.s32 1, %s18
    %s28 = scalar_select %p25, %s27, %s18
    %p29 = scmp.ge.s32.totalorder %s28, 1
    %s30 = scalar_select %p29, 0, %s28
    %s31 = ssub.s32 %s19, %s26
    %s32 = ssub.s32 %s18, %s30
    %s33 = sor.u32 %s31, %s32
    %p34 = scmp.eq.s32.totalorder %s33, 0
    %s36 = sadd.s32 %s35, 1
    %s37 = scalar_select %p34, %s35, %s36
    %p40 = pneg %p34
    %p41 = scmp.eq.s32.totalorder %s11, 3
    %p42 = por %p40, %p41
    %p43 = scmp.ne.s32.totalorder %s35, %s38
    %p44 = scmp.eq.s32.totalorder %s11, 0
    %p45 = por %p43, %p44
    %p46 = scmp.ne.s32.totalorder %s35, %s38
    %p47 = scmp.eq.s32.totalorder %s16, 3
    %p48 = por %p46, %p47
    %p49 = scmp.ne.s32.totalorder %s38, %s39
    %p50 = scmp.eq.s32.totalorder %s16, 0
    %p51 = por %p49, %p50
    %p52 = scmp.ne.s32.totalorder %s38, %s39
    %p53 = scmp.eq.s32.totalorder %s17, 3
    %p54 = por %p52, %p53
    %p56 = scmp.ne.s32.totalorder %s39, %s55
    %p57 = scmp.eq.s32.totalorder %s17, 0
    %p58 = por %p56, %p57
    %s59 = ssub.s32 %s18, %s30
    %p60 = scmp.eq.s32.totalorder %s59, 0
    %s62 = sadd.s32 %s61, 1
    %s63 = scalar_select %p60, %s61, %s62
    %p66 = pneg %p60
    %p67 = scmp.eq.s32.totalorder %s11, 3
    %p68 = por %p66, %p67
    %p69 = scmp.ne.s32.totalorder %s61, %s64
    %p70 = scmp.eq.s32.totalorder %s11, 0
    %p71 = por %p69, %p70
    %p72 = scmp.ne.s32.totalorder %s61, %s64
    %p73 = scmp.eq.s32.totalorder %s16, 3
    %p74 = por %p72, %p73
    %p75 = scmp.ne.s32.totalorder %s64, %s65
    %p76 = scmp.eq.s32.totalorder %s16, 0
    %p77 = por %p75, %p76
    %p78 = scmp.ne.s32.totalorder %s64, %s65
    %p79 = scmp.eq.s32.totalorder %s17, 3
    %p80 = por %p78, %p79
    %p82 = scmp.ne.s32.totalorder %s65, %s81
    %p83 = scmp.eq.s32.totalorder %s17, 0
    %p84 = por %p82, %p83
    %s85 = ssub.s32 %s18, %s30
    %p86 = scmp.eq.s32.totalorder %s85, 0
    %s88 = sadd.s32 %s87, 1
    %s89 = scalar_select %p86, %s87, %s88
    %p92 = pneg %p86
    %p93 = scmp.eq.s32.totalorder %s11, 3
    %p94 = por %p92, %p93
    %p95 = scmp.ne.s32.totalorder %s87, %s90
    %p96 = scmp.eq.s32.totalorder %s11, 0
    %p97 = por %p95, %p96
    %p98 = scmp.ne.s32.totalorder %s87, %s90
    %p99 = scmp.eq.s32.totalorder %s16, 3
    %p100 = por %p98, %p99
    %p101 = scmp.ne.s32.totalorder %s90, %s91
    %p102 = scmp.eq.s32.totalorder %s16, 0
    %p103 = por %p101, %p102
    %p104 = scmp.ne.s32.totalorder %s90, %s91
    %p105 = scmp.eq.s32.totalorder %s17, 3
    %p106 = por %p104, %p105
    %p108 = scmp.ne.s32.totalorder %s91, %s107
    %p109 = scmp.eq.s32.totalorder %s17, 0
    %p110 = por %p108, %p109
    %s111 = ssub.s32 %s19, %s26
    %s112 = ssub.s32 %s18, %s30
    %s113 = sor.u32 %s111, %s112
    %p114 = scmp.eq.s32.totalorder %s113, 0
    %s116 = sadd.s32 %s115, 1
    %s117 = scalar_select %p114, %s115, %s116
    %p120 = pneg %p114
    %p121 = scmp.eq.s32.totalorder %s11, 3
    %p122 = por %p120, %p121
    %p123 = scmp.ne.s32.totalorder %s115, %s118
    %p124 = scmp.eq.s32.totalorder %s11, 0
    %p125 = por %p123, %p124
    %p126 = scmp.ne.s32.totalorder %s115, %s118
    %p127 = scmp.eq.s32.totalorder %s16, 3
    %p128 = por %p126, %p127
    %p129 = scmp.ne.s32.totalorder %s118, %s119
    %p130 = scmp.eq.s32.totalorder %s16, 0
    %p131 = por %p129, %p130
    %p132 = scmp.ne.s32.totalorder %s118, %s119
    %p133 = scmp.eq.s32.totalorder %s17, 3
    %p134 = por %p132, %p133
    %p136 = scmp.ne.s32.totalorder %s119, %s135
    %p137 = scmp.eq.s32.totalorder %s17, 0
    %p138 = por %p136, %p137
    %s139 = ssub.s32 %s19, %s26
    %s140 = ssub.s32 %s18, %s30
    %s141 = sor.u32 %s139, %s140
    %p142 = scmp.eq.s32.totalorder %s141, 0
    %s144 = sadd.s32 %s143, 1
    %s145 = scalar_select %p142, %s143, %s144
    %p148 = pneg %p142
    %p149 = scmp.eq.s32.totalorder %s11, 3
    %p150 = por %p148, %p149
    %p151 = scmp.ne.s32.totalorder %s143, %s146
    %p152 = scmp.eq.s32.totalorder %s11, 0
    %p153 = por %p151, %p152
    %p154 = scmp.ne.s32.totalorder %s143, %s146
    %p155 = scmp.eq.s32.totalorder %s16, 3
    %p156 = por %p154, %p155
    %p157 = scmp.ne.s32.totalorder %s146, %s147
    %p158 = scmp.eq.s32.totalorder %s16, 0
    %p159 = por %p157, %p158
    %p160 = scmp.ne.s32.totalorder %s146, %s147
    %p161 = scmp.eq.s32.totalorder %s17, 3
    %p162 = por %p160, %p161
    %p164 = scmp.ne.s32.totalorder %s147, %s163
    %p165 = scmp.eq.s32.totalorder %s17, 0
    %p166 = por %p164, %p165
    %p167 = scmp.le.s32.totalorder 1, %s11
    %p168 = scmp.lt.s32.totalorder %s11, 5
    %p169 = pnand %p167, %p168
    %p170 = pneg %p169
    // Predicated region
    $region9: #{_forward_impl.4} parent=5 // pred_check
      _
    $region10: #{_forward_impl.4} parent=5 // pred_check_branch
      %172 = sbr.rel (%p169) target = $region12
    $region11: #{_forward_impl.4} parent=5 // pred_region
      %s173 = ssub.s32 %s11, 1
      // Predicated region
      $region13: #{_forward_impl.4} parent=11 // pred_check
        %p174 = pneg %p77
      $region14: #{_forward_impl.4} parent=11 // pred_check_branch
        %176 = sbr.rel (%p174) target = $region16
      $region15: #{_forward_impl.4} parent=11 // pred_region
        %s177 = smul.u32 4, %s20
        %p178 = scmp.lt.s32.totalorder %s177, 3
        %s179 = scalar_select %p178, %s177, 3
        %s180 = smul.addr %s179, 8
        %s181 = scalar_lea.vmem %s1, %s180
        %s182 = smul.u32 4, %s20
      $region16: #{_forward_impl.4} parent=11 // pred_fallthru
        _
      // Predicated region
      $region17: #{_forward_impl.4} parent=11 // pred_check
        %p183 = pneg %p103
      $region18: #{_forward_impl.4} parent=11 // pred_check_branch
        %185 = sbr.rel (%p183) target = $region20
      $region19: #{_forward_impl.4} parent=11 // pred_region
        %s186 = smul.u32 4, %s20
        %p187 = scmp.lt.s32.totalorder %s186, 3
        %s188 = scalar_select %p187, %s186, 3
        %s189 = smul.addr %s188, 8
        %s190 = scalar_lea.vmem %s2, %s189
        %s191 = smul.u32 4, %s20
      $region20: #{_forward_impl.4} parent=11 // pred_fallthru
        _
    $region12: #{_forward_impl.4} parent=5 // pred_fallthru
      _
    %p192 = scmp.lt.s32.totalorder %s11, 4
    // Predicated region
    $region21: #{_forward_impl.4} parent=5 // pred_check
      %p193 = pneg %p192
    $region22: #{_forward_impl.4} parent=5 // pred_check_branch
      %195 = sbr.rel (%p193) target = $region24
    $region23: #{_forward_impl.4} parent=5 // pred_region
      // Predicated region
      $region25: #{_forward_impl.4} parent=23 // pred_check
        %p196 = pneg %p45
      $region26: #{_forward_impl.4} parent=23 // pred_check_branch
        %198 = sbr.rel (%p196) target = $region28
      $region27: #{_forward_impl.4} parent=23 // pred_region
        %s199 = smul.u32 4, %s18
        %p200 = scmp.lt.s32.totalorder %s19, 3
        %s201 = scalar_select %p200, %s19, 3
        %p202 = scmp.lt.s32.totalorder %s199, 3
        %s203 = scalar_select %p202, %s199, 3
        %s204 = smul.addr %s201, 4
        %s205 = sadd.s32 %s203, %s204
        %s206 = smul.addr %s205, 4
        %s207 = scalar_lea.vmem %s0, %s206
        %s208 = smul.u32 4, %s18
      $region28: #{_forward_impl.4} parent=23 // pred_fallthru
        _
    $region24: #{_forward_impl.4} parent=5 // pred_fallthru
      _
    %p209 = scmp.le.s32.totalorder 1, %s11
    %p210 = scmp.lt.s32.totalorder %s11, 5
    %p211 = pnand %p209, %p210
    %p212 = pneg %p211
    // Predicated region
    $region29: #{_forward_impl.4} parent=5 // pred_check
      _
    $region30: #{_forward_impl.4} parent=5 // pred_check_branch
      %214 = sbr.rel (%p211) target = $region32
    $region31: #{_forward_impl.4} parent=5 // pred_region
      %s215 = ssub.s32 %s11, 1
      %s216 = smul.u32 4, %s20
      %p217 = scmp.lt.s32.totalorder %s21, 3
      %s218 = scalar_select %p217, %s21, 3
      %p219 = scmp.lt.s32.totalorder %s216, 3
      %s220 = scalar_select %p219, %s216, 3
      %s221 = smul.addr %s218, 4
      %s222 = sadd.s32 %s220, %s221
      %s223 = smul.addr %s222, 4
      %s224 = scalar_lea.vmem %s0, %s223
      %p225 = pneg %p51
      %p226 = pneg %p48
      %s227 = smul.u32 4, %s20
      %p228 = scmp.lt.s32.totalorder %s227, 3
      %s229 = scalar_select %p228, %s227, 3
      %s230 = smul.addr %s229, 8
      %s231 = scalar_lea.vmem %s1, %s230
      %p232 = pneg %p77
      %p233 = pneg %p74
      %s234 = smul.u32 4, %s20
      %p235 = scmp.lt.s32.totalorder %s234, 3
      %s236 = scalar_select %p235, %s234, 3
      %s237 = smul.addr %s236, 8
      %s238 = scalar_lea.vmem %s2, %s237
      %p239 = pneg %p103
      %p240 = pneg %p100
      %p241 = pneg %p131
      %p242 = pneg %p128
      %s243 = smul.u32 4, %s20
      %p244 = scmp.lt.s32.totalorder %s21, 3
      %s245 = scalar_select %p244, %s21, 3
      %p246 = scmp.lt.s32.totalorder %s243, 3
      %s247 = scalar_select %p246, %s243, 3
      %s248 = smul.addr %s245, 4
      %s249 = sadd.s32 %s247, %s248
      %s250 = smul.addr %s249, 8
      %s251 = scalar_lea.vmem %s3, %s250
      %p252 = pneg %p159
      %p253 = pneg %p156
      %s254 = smul.u32 4, %s20
      %p255 = scmp.lt.s32.totalorder %s21, 3
      %s256 = scalar_select %p255, %s21, 3
      %p257 = scmp.lt.s32.totalorder %s254, 3
      %s258 = scalar_select %p257, %s254, 3
      %s259 = smul.addr %s256, 4
      %s260 = sadd.s32 %s258, %s259
      %s261 = smul.addr %s260, 8
      %s262 = scalar_lea.vmem %s4, %s261
      %s263 = smul.u32 4, %s20
      %p264 = scmp.lt.s32.totalorder %s21, 3
      %s265 = scalar_select %p264, %s21, 3
      %p266 = scmp.lt.s32.totalorder %s263, 3
      %s267 = scalar_select %p266, %s263, 3
      %s268 = smul.addr %s265, 4
      %s269 = sadd.s32 %s267, %s268
      %s270 = smul.addr %s269, 4
      %s271 = scalar_lea.vmem %s0, %s270
      %s272 = smul.u32 4, %s20
      %s273 = smul.u32 4, %s20
      %p274 = scmp.lt.s32.totalorder %s273, 3
      %s275 = scalar_select %p274, %s273, 3
      %s276 = smul.addr %s275, 8
      %s277 = scalar_lea.vmem %s1, %s276
      %s278 = smul.u32 4, %s20
      %s279 = smul.u32 4, %s20
      %p280 = scmp.lt.s32.totalorder %s279, 3
      %s281 = scalar_select %p280, %s279, 3
      %s282 = smul.addr %s281, 8
      %s283 = scalar_lea.vmem %s2, %s282
      %s284 = smul.u32 4, %s20
      %s285 = smul.u32 4, %s20
      %p286 = scmp.lt.s32.totalorder %s21, 3
      %s287 = scalar_select %p286, %s21, 3
      %p288 = scmp.lt.s32.totalorder %s285, 3
      %s289 = scalar_select %p288, %s285, 3
      %s290 = smul.addr %s287, 4
      %s291 = sadd.s32 %s289, %s290
      %s292 = smul.addr %s291, 8
      %s293 = scalar_lea.vmem %s3, %s292
      %s294 = smul.u32 4, %s20
      %s295 = smul.u32 4, %s20
      %p296 = scmp.lt.s32.totalorder %s21, 3
      %s297 = scalar_select %p296, %s21, 3
      %p298 = scmp.lt.s32.totalorder %s295, 3
      %s299 = scalar_select %p298, %s295, 3
      %s300 = smul.addr %s297, 4
      %s301 = sadd.s32 %s299, %s300
      %s302 = smul.addr %s301, 8
      %s303 = scalar_lea.vmem %s4, %s302
      %s304 = smul.u32 4, %s20
      %v305 = vld [vmem:[%s271] sm:$0xf]
      %v306 = vld [vmem:[%s271 + $0x4] sm:$0xf]
      %v307 = vld [vmem:[%s271 + $0x8] sm:$0xf]
      %v308 = vld [vmem:[%s271 + $0xc] sm:$0xf]
      %v309 = vunpack.c.l.bf16 %v305
      %v310 = vunpack.c.l.bf16 %v306
      %v311 = vunpack.c.l.bf16 %v307
      %v312 = vunpack.c.l.bf16 %v308
      %v313 = vld [vmem:[%s277] sm:$0xff]
      %v314 = vld [vmem:[%s277 + $0x8] sm:$0xff]
      %v315 = vld [vmem:[%s277 + $0x10] sm:$0xff]
      %v316 = vld [vmem:[%s277 + $0x18] sm:$0xff]
      %v317 = vld [vmem:[%s283] sm:$0xff]
      %v318 = vld [vmem:[%s283 + $0x8] sm:$0xff]
      %v319 = vld [vmem:[%s283 + $0x10] sm:$0xff]
      %v320 = vld [vmem:[%s283 + $0x18] sm:$0xff]
      %v321 = vmul.f32 %v309, %v313
      %v322 = vmul.f32 %v310, %v314
      %v323 = vmul.f32 %v311, %v315
      %v324 = vmul.f32 %v312, %v316
      %325 = vst [vmem:[%s293] sm:$0xff] %v321
      %326 = vst [vmem:[%s293 + $0x8] sm:$0xff] %v322
      %327 = vst [vmem:[%s293 + $0x10] sm:$0xff] %v323
      %328 = vst [vmem:[%s293 + $0x18] sm:$0xff] %v324
      %v329 = vmul.f32 %v309, %v317
      %v330 = vmul.f32 %v310, %v318
      %v331 = vmul.f32 %v311, %v319
      %v332 = vmul.f32 %v312, %v320
      %333 = vst [vmem:[%s303] sm:$0xff] %v329
      %334 = vst [vmem:[%s303 + $0x8] sm:$0xff] %v330
      %335 = vst [vmem:[%s303 + $0x10] sm:$0xff] %v331
      %336 = vst [vmem:[%s303 + $0x18] sm:$0xff] %v332
      %s337 = smul.u32 4, %s20
      %p338 = scmp.lt.s32.totalorder %s21, 3
      %s339 = scalar_select %p338, %s21, 3
      %p340 = scmp.lt.s32.totalorder %s337, 3
      %s341 = scalar_select %p340, %s337, 3
      %s342 = smul.addr %s339, 4
      %s343 = sadd.s32 %s341, %s342
      %s344 = smul.addr %s343, 8
      %s345 = scalar_lea.vmem %s3, %s344
      %s346 = smul.u32 4, %s20
      %p347 = scmp.lt.s32.totalorder %s21, 3
      %s348 = scalar_select %p347, %s21, 3
      %p349 = scmp.lt.s32.totalorder %s346, 3
      %s350 = scalar_select %p349, %s346, 3
      %s351 = smul.addr %s348, 4
      %s352 = sadd.s32 %s350, %s351
      %s353 = smul.addr %s352, 8
      %s354 = scalar_lea.vmem %s4, %s353
      // Predicated region
      $region33: #{_forward_impl.4} parent=31 // pred_check
        %p355 = pneg %p128
      $region34: #{_forward_impl.4} parent=31 // pred_check_branch
        %357 = sbr.rel (%p355) target = $region36
      $region35: #{_forward_impl.4} parent=31 // pred_region
        %s358 = smul.u32 4, %s20
      $region36: #{_forward_impl.4} parent=31 // pred_fallthru
        _
      // Predicated region
      $region37: #{_forward_impl.4} parent=31 // pred_check
        %p359 = pneg %p156
      $region38: #{_forward_impl.4} parent=31 // pred_check_branch
        %361 = sbr.rel (%p359) target = $region40
      $region39: #{_forward_impl.4} parent=31 // pred_region
        %s362 = smul.u32 4, %s20
      $region40: #{_forward_impl.4} parent=31 // pred_fallthru
        _
    $region32: #{_forward_impl.4} parent=5 // pred_fallthru
      _
    %p363 = scmp.le.s32.totalorder 2, %s11
    // Predicated region
    $region41: #{_forward_impl.4} parent=5 // pred_check
      %p364 = pneg %p363
    $region42: #{_forward_impl.4} parent=5 // pred_check_branch
      %366 = sbr.rel (%p364) target = $region44
    $region43: #{_forward_impl.4} parent=5 // pred_region
      %s367 = ssub.s32 %s11, 2
      // Predicated region
      $region45: #{_forward_impl.4} parent=43 // pred_check
        %p368 = pneg %p134
      $region46: #{_forward_impl.4} parent=43 // pred_check_branch
        %370 = sbr.rel (%p368) target = $region48
      $region47: #{_forward_impl.4} parent=43 // pred_region
        %s371 = smul.u32 4, %s22
        %p372 = scmp.lt.s32.totalorder %s23, 3
        %s373 = scalar_select %p372, %s23, 3
        %p374 = scmp.lt.s32.totalorder %s371, 3
        %s375 = scalar_select %p374, %s371, 3
        %s376 = smul.addr %s373, 4
        %s377 = sadd.s32 %s375, %s376
        %s378 = smul.addr %s377, 8
        %s379 = scalar_lea.vmem %s3, %s378
      $region48: #{_forward_impl.4} parent=43 // pred_fallthru
        _
      // Predicated region
      $region49: #{_forward_impl.4} parent=43 // pred_check
        %p380 = pneg %p162
      $region50: #{_forward_impl.4} parent=43 // pred_check_branch
        %382 = sbr.rel (%p380) target = $region52
      $region51: #{_forward_impl.4} parent=43 // pred_region
        %s383 = smul.u32 4, %s22
        %p384 = scmp.lt.s32.totalorder %s23, 3
        %s385 = scalar_select %p384, %s23, 3
        %p386 = scmp.lt.s32.totalorder %s383, 3
        %s387 = scalar_select %p386, %s383, 3
        %s388 = smul.addr %s385, 4
        %s389 = sadd.s32 %s387, %s388
        %s390 = smul.addr %s389, 8
        %s391 = scalar_lea.vmem %s4, %s390
      $region52: #{_forward_impl.4} parent=43 // pred_fallthru
        _
    $region44: #{_forward_impl.4} parent=5 // pred_fallthru
      _
  $region6: #{_forward_impl.4} parent=0 // loop_footer
    %s15 = sadd.s32 1, %s11
  $region7: #{_forward_impl.4} parent=0 // loop_footer_branch
    %10 = sbr.rel target = $region3
  $region8: #{_forward_impl.4} parent=0 // loop_exit
    _

// kernel: _forward_impl.5
$region0: #{_forward_impl.5}
  #allocation0 [shape = 'u32[]', space=smem, size = 0x4, offset = 0x4, fixed_abs, tag = 'smem constant byte address 0x4 - core index']
  #allocation1 [shape = 'u32[72,128]{1,0:T(1,128)}', space=vmem, size = 0x9000, scoped, tag = 'internal scratch']
  %s0 = inlined_call_operand.vmem [shape: f32[4,32,128], index: 0, kind: input, shape index: {}]
  %s1 = inlined_call_operand.vmem [shape: f32[4,32,128], index: 1, kind: input, shape index: {}]
  %s2 = inlined_call_operand.vmem [shape: f32[4,3,128], index: 2, kind: output, shape index: {}]
  %s3 = sld [smem:[#allocation0]]
  $region45: #{_forward_impl.5} parent=0
    _
  %s5 = ssub.s32 1, %s3
  %s6 = scalar_select 0, %s5, %s3
  loop: start=0, step=1, limit=6
  $region2: #{_forward_impl.5} parent=0 // loop_pre_header
    _
  $region3: #{_forward_impl.5} parent=0 // loop_header
    %s8 = sphi 0, %s12
    %p9 = scmp.ge.s32.totalorder %s8, 6
    %s15 = sphi 0, %s27
    %s16 = sphi 0, %s23
    %s17 = sphi 0, %s15
    %s18 = sphi 0, %s16
    %s19 = sphi 0, %s17
    %s20 = sphi 0, %s18
    %s32 = sphi 0, %s34
    %s35 = sphi 0, %s32
    %s36 = sphi 0, %s35
    %s52 = sphi 0, %s36
    %s60 = sphi 0, %s62
    %s63 = sphi 0, %s60
    %s64 = sphi 0, %s63
    %s80 = sphi 0, %s64
    %s86 = sphi 0, %s88
    %s89 = sphi 0, %s86
    %s90 = sphi 0, %s89
    %s106 = sphi 0, %s90
  $region4: #{_forward_impl.5} parent=0 // loop_header_branch
    %11 = sbr.rel (%p9) target = $region8
  $region5: #{_forward_impl.5} parent=0 // loop_body
    %s13 = ssub.s32 %s8, 1
    %s14 = ssub.s32 %s8, 2
    %s21 = sadd.s32 1, %s16
    %p22 = scmp.ge.s32.totalorder %s21, 1
    %s23 = scalar_select %p22, 0, %s21
    %s24 = sadd.s32 1, %s15
    %s25 = scalar_select %p22, %s24, %s15
    %p26 = scmp.ge.s32.totalorder %s25, 4
    %s27 = scalar_select %p26, 0, %s25
    %s28 = ssub.s32 %s15, %s27
    %s29 = ssub.s32 %s16, %s23
    %s30 = sor.u32 %s28, %s29
    %p31 = scmp.eq.s32.totalorder %s30, 0
    %s33 = sadd.s32 %s32, 1
    %s34 = scalar_select %p31, %s32, %s33
    %p37 = pneg %p31
    %p38 = scmp.eq.s32.totalorder %s8, 3
    %p39 = por %p37, %p38
    %p40 = scmp.ne.s32.totalorder %s32, %s35
    %p41 = scmp.eq.s32.totalorder %s8, 0
    %p42 = por %p40, %p41
    %p43 = scmp.ne.s32.totalorder %s32, %s35
    %p44 = scmp.eq.s32.totalorder %s13, 3
    %p45 = por %p43, %p44
    %p46 = scmp.ne.s32.totalorder %s35, %s36
    %p47 = scmp.eq.s32.totalorder %s13, 0
    %p48 = por %p46, %p47
    %p49 = scmp.ne.s32.totalorder %s35, %s36
    %p50 = scmp.eq.s32.totalorder %s14, 3
    %p51 = por %p49, %p50
    %p53 = scmp.ne.s32.totalorder %s36, %s52
    %p54 = scmp.eq.s32.totalorder %s14, 0
    %p55 = por %p53, %p54
    %s56 = ssub.s32 %s15, %s27
    %s57 = ssub.s32 %s16, %s23
    %s58 = sor.u32 %s56, %s57
    %p59 = scmp.eq.s32.totalorder %s58, 0
    %s61 = sadd.s32 %s60, 1
    %s62 = scalar_select %p59, %s60, %s61
    %p65 = pneg %p59
    %p66 = scmp.eq.s32.totalorder %s8, 3
    %p67 = por %p65, %p66
    %p68 = scmp.ne.s32.totalorder %s60, %s63
    %p69 = scmp.eq.s32.totalorder %s8, 0
    %p70 = por %p68, %p69
    %p71 = scmp.ne.s32.totalorder %s60, %s63
    %p72 = scmp.eq.s32.totalorder %s13, 3
    %p73 = por %p71, %p72
    %p74 = scmp.ne.s32.totalorder %s63, %s64
    %p75 = scmp.eq.s32.totalorder %s13, 0
    %p76 = por %p74, %p75
    %p77 = scmp.ne.s32.totalorder %s63, %s64
    %p78 = scmp.eq.s32.totalorder %s14, 3
    %p79 = por %p77, %p78
    %p81 = scmp.ne.s32.totalorder %s64, %s80
    %p82 = scmp.eq.s32.totalorder %s14, 0
    %p83 = por %p81, %p82
    %s84 = ssub.s32 %s15, %s27
    %p85 = scmp.eq.s32.totalorder %s84, 0
    %s87 = sadd.s32 %s86, 1
    %s88 = scalar_select %p85, %s86, %s87
    %p91 = pneg %p85
    %p92 = scmp.eq.s32.totalorder %s8, 3
    %p93 = por %p91, %p92
    %p94 = scmp.ne.s32.totalorder %s86, %s89
    %p95 = scmp.eq.s32.totalorder %s8, 0
    %p96 = por %p94, %p95
    %p97 = scmp.ne.s32.totalorder %s86, %s89
    %p98 = scmp.eq.s32.totalorder %s13, 3
    %p99 = por %p97, %p98
    %p100 = scmp.ne.s32.totalorder %s89, %s90
    %p101 = scmp.eq.s32.totalorder %s13, 0
    %p102 = por %p100, %p101
    %p103 = scmp.ne.s32.totalorder %s89, %s90
    %p104 = scmp.eq.s32.totalorder %s14, 3
    %p105 = por %p103, %p104
    %p107 = scmp.ne.s32.totalorder %s90, %s106
    %p108 = scmp.eq.s32.totalorder %s14, 0
    %p109 = por %p107, %p108
    %p110 = scmp.le.s32.totalorder 1, %s8
    %p111 = scmp.lt.s32.totalorder %s8, 5
    %p112 = pnand %p110, %p111
    %p113 = pneg %p112
    // Predicated region
    $region9: #{_forward_impl.5} parent=5 // pred_check
      _
    $region10: #{_forward_impl.5} parent=5 // pred_check_branch
      %115 = sbr.rel (%p112) target = $region12
    $region11: #{_forward_impl.5} parent=5 // pred_region
      %s116 = ssub.s32 %s8, 1
    $region12: #{_forward_impl.5} parent=5 // pred_fallthru
      _
    %p117 = scmp.lt.s32.totalorder %s8, 4
    // Predicated region
    $region13: #{_forward_impl.5} parent=5 // pred_check
      %p118 = pneg %p117
    $region14: #{_forward_impl.5} parent=5 // pred_check_branch
      %120 = sbr.rel (%p118) target = $region16
    $region15: #{_forward_impl.5} parent=5 // pred_region
      // Predicated region
      $region17: #{_forward_impl.5} parent=15 // pred_check
        %p121 = pneg %p42
      $region18: #{_forward_impl.5} parent=15 // pred_check_branch
        %123 = sbr.rel (%p121) target = $region20
      $region19: #{_forward_impl.5} parent=15 // pred_region
        %s124 = smul.u32 4, %s16
        %p125 = scmp.lt.s32.totalorder %s15, 3
        %s126 = scalar_select %p125, %s15, 3
        %p127 = scmp.lt.s32.totalorder %s124, 3
        %s128 = scalar_select %p127, %s124, 3
        %s129 = smul.addr %s126, 4
        %s130 = sadd.s32 %s128, %s129
        %s131 = smul.addr %s130, 8
        %s132 = scalar_lea.vmem %s0, %s131
        %s133 = smul.u32 4, %s16
      $region20: #{_forward_impl.5} parent=15 // pred_fallthru
        _
      // Predicated region
      $region21: #{_forward_impl.5} parent=15 // pred_check
        %p134 = pneg %p70
      $region22: #{_forward_impl.5} parent=15 // pred_check_branch
        %136 = sbr.rel (%p134) target = $region24
      $region23: #{_forward_impl.5} parent=15 // pred_region
        %s137 = smul.u32 4, %s16
        %p138 = scmp.lt.s32.totalorder %s15, 3
        %s139 = scalar_select %p138, %s15, 3
        %p140 = scmp.lt.s32.totalorder %s137, 3
        %s141 = scalar_select %p140, %s137, 3
        %s142 = smul.addr %s139, 4
        %s143 = sadd.s32 %s141, %s142
        %s144 = smul.addr %s143, 8
        %s145 = scalar_lea.vmem %s1, %s144
        %s146 = smul.u32 4, %s16
      $region24: #{_forward_impl.5} parent=15 // pred_fallthru
        _
    $region16: #{_forward_impl.5} parent=5 // pred_fallthru
      _
    %p147 = scmp.le.s32.totalorder 1, %s8
    %p148 = scmp.lt.s32.totalorder %s8, 5
    %p149 = pnand %p147, %p148
    %p150 = pneg %p149
    // Predicated region
    $region25: #{_forward_impl.5} parent=5 // pred_check
      _
    $region26: #{_forward_impl.5} parent=5 // pred_check_branch
      %152 = sbr.rel (%p149) target = $region28
    $region27: #{_forward_impl.5} parent=5 // pred_region
      %s153 = ssub.s32 %s8, 1
      %s154 = smul.u32 4, %s18
      %p155 = scmp.lt.s32.totalorder %s17, 3
      %s156 = scalar_select %p155, %s17, 3
      %p157 = scmp.lt.s32.totalorder %s154, 3
      %s158 = scalar_select %p157, %s154, 3
      %s159 = smul.addr %s156, 4
      %s160 = sadd.s32 %s158, %s159
      %s161 = smul.addr %s160, 8
      %s162 = scalar_lea.vmem %s0, %s161
      %p163 = pneg %p48
      %p164 = pneg %p45
      %s165 = smul.u32 4, %s18
      %p166 = scmp.lt.s32.totalorder %s17, 3
      %s167 = scalar_select %p166, %s17, 3
      %p168 = scmp.lt.s32.totalorder %s165, 3
      %s169 = scalar_select %p168, %s165, 3
      %s170 = smul.addr %s167, 4
      %s171 = sadd.s32 %s169, %s170
      %s172 = smul.addr %s171, 8
      %s173 = scalar_lea.vmem %s1, %s172
      %p174 = pneg %p76
      %p175 = pneg %p73
      %p176 = pneg %p102
      %p177 = pneg %p99
      %p178 = scmp.lt.s32.totalorder %s17, 3
      %s179 = scalar_select %p178, %s17, 3
      %s180 = smul.addr %s179, 4
      %s181 = scalar_lea.vmem %s2, %s180
      %s182 = smul.u32 4, %s18
      %p183 = scmp.lt.s32.totalorder %s17, 3
      %s184 = scalar_select %p183, %s17, 3
      %p185 = scmp.lt.s32.totalorder %s182, 3
      %s186 = scalar_select %p185, %s182, 3
      %s187 = smul.addr %s184, 4
      %s188 = sadd.s32 %s186, %s187
      %s189 = smul.addr %s188, 8
      %s190 = scalar_lea.vmem %s0, %s189
      %s191 = smul.u32 4, %s18
      %s192 = smul.u32 4, %s18
      %p193 = scmp.lt.s32.totalorder %s17, 3
      %s194 = scalar_select %p193, %s17, 3
      %p195 = scmp.lt.s32.totalorder %s192, 3
      %s196 = scalar_select %p195, %s192, 3
      %s197 = smul.addr %s194, 4
      %s198 = sadd.s32 %s196, %s197
      %s199 = smul.addr %s198, 8
      %s200 = scalar_lea.vmem %s1, %s199
      %s201 = smul.u32 4, %s18
      %p202 = scmp.lt.s32.totalorder %s17, 3
      %s203 = scalar_select %p202, %s17, 3
      %s204 = smul.addr %s203, 4
      %s205 = scalar_lea.vmem %s2, %s204
      %p206 = scmp.eq.s32.totalorder %s18, 0
      // Predicated region
      $region29: #{_forward_impl.5} parent=27 // pred_check
        %p207 = pneg %p206
      $region30: #{_forward_impl.5} parent=27 // pred_check_branch
        %209 = sbr.rel (%p207) target = $region32
      $region31: #{_forward_impl.5} parent=27 // pred_region
        %210 = vst [vmem:[%s205] sm:$0x7] 0.0
      $region32: #{_forward_impl.5} parent=27 // pred_fallthru
        _
      %v211 = vld [vmem:[%s190] sm:$0xff]
      %v212 = vld [vmem:[%s190 + $0x8] sm:$0xff]
      %v213 = vld [vmem:[%s190 + $0x10] sm:$0xff]
      %v214 = vld [vmem:[%s190 + $0x18] sm:$0xff]
      %v215 = vld [vmem:[%s200] sm:$0xff]
      %v216 = vld [vmem:[%s200 + $0x8] sm:$0xff]
      %v217 = vld [vmem:[%s200 + $0x10] sm:$0xff]
      %v218 = vld [vmem:[%s200 + $0x18] sm:$0xff]
      %v219 = vmul.f32 %v211, %v211
      %v220 = vmul.f32 %v212, %v212
      %v221 = vmul.f32 %v213, %v213
      %v222 = vmul.f32 %v214, %v214
      %v223 = vmul.f32 %v215, %v215
      %v224 = vmul.f32 %v216, %v216
      %v225 = vmul.f32 %v217, %v217
      %v226 = vmul.f32 %v218, %v218
      %v227 = vadd.f32 %v219, %v223
      %v228 = vadd.f32 %v220, %v224
      %v229 = vadd.f32 %v221, %v225
      %v230 = vadd.f32 %v222, %v226
      %v231 = vrsqrt.pop %v227
      %v232 = vmul.f32 %v231, %v227
      %v233 = vmul.f32 %v232, %v231
      %v234 = vmul.f32 0.5, %v233
      %v235 = vsub.f32 1.5, %v234
      %v236 = vmul.f32 %v231, %v235
      %v237 = vmul.f32 %v227, %v236
      %vm238 = vcmp.eq.f32.partialorder %v227, inf
      %v239 = vsel %vm238, %v227, %v237
      %vm240 = vcmp.eq.f32.partialorder %v227, 0.0
      %v241 = vand.u32 %v227, 2147483648
      %v242 = vsel %vm240, %v241, %v239
      %v243 = vrsqrt.pop %v228
      %v244 = vmul.f32 %v243, %v228
      %v245 = vmul.f32 %v244, %v243
      %v246 = vmul.f32 0.5, %v245
      %v247 = vsub.f32 1.5, %v246
      %v248 = vmul.f32 %v243, %v247
      %v249 = vmul.f32 %v228, %v248
      %vm250 = vcmp.eq.f32.partialorder %v228, inf
      %v251 = vsel %vm250, %v228, %v249
      %vm252 = vcmp.eq.f32.partialorder %v228, 0.0
      %v253 = vand.u32 %v228, 2147483648
      %v254 = vsel %vm252, %v253, %v251
      %v255 = vrsqrt.pop %v229
      %v256 = vmul.f32 %v255, %v229
      %v257 = vmul.f32 %v256, %v255
      %v258 = vmul.f32 0.5, %v257
      %v259 = vsub.f32 1.5, %v258
      %v260 = vmul.f32 %v255, %v259
      %v261 = vmul.f32 %v229, %v260
      %vm262 = vcmp.eq.f32.partialorder %v229, inf
      %v263 = vsel %vm262, %v229, %v261
      %vm264 = vcmp.eq.f32.partialorder %v229, 0.0
      %v265 = vand.u32 %v229, 2147483648
      %v266 = vsel %vm264, %v265, %v263
      %v267 = vrsqrt.pop %v230
      %v268 = vmul.f32 %v267, %v230
      %v269 = vmul.f32 %v268, %v267
      %v270 = vmul.f32 0.5, %v269
      %v271 = vsub.f32 1.5, %v270
      %v272 = vmul.f32 %v267, %v271
      %v273 = vmul.f32 %v230, %v272
      %vm274 = vcmp.eq.f32.partialorder %v230, inf
      %v275 = vsel %vm274, %v230, %v273
      %vm276 = vcmp.eq.f32.partialorder %v230, 0.0
      %v277 = vand.u32 %v230, 2147483648
      %v278 = vsel %vm276, %v277, %v275
      %v279 = vrsqrt.pop %v242
      %v280 = vmul.f32 %v279, %v242
      %v281 = vmul.f32 %v280, %v279
      %v282 = vmul.f32 0.5, %v281
      %v283 = vsub.f32 1.5, %v282
      %v284 = vmul.f32 %v279, %v283
      %v285 = vmul.f32 %v242, %v284
      %vm286 = vcmp.eq.f32.partialorder %v242, inf
      %v287 = vsel %vm286, %v242, %v285
      %vm288 = vcmp.eq.f32.partialorder %v242, 0.0
      %v289 = vand.u32 %v242, 2147483648
      %v290 = vsel %vm288, %v289, %v287
      %v291 = vrsqrt.pop %v254
      %v292 = vmul.f32 %v291, %v254
      %v293 = vmul.f32 %v292, %v291
      %v294 = vmul.f32 0.5, %v293
      %v295 = vsub.f32 1.5, %v294
      %v296 = vmul.f32 %v291, %v295
      %v297 = vmul.f32 %v254, %v296
      %vm298 = vcmp.eq.f32.partialorder %v254, inf
      %v299 = vsel %vm298, %v254, %v297
      %vm300 = vcmp.eq.f32.partialorder %v254, 0.0
      %v301 = vand.u32 %v254, 2147483648
      %v302 = vsel %vm300, %v301, %v299
      %v303 = vrsqrt.pop %v266
      %v304 = vmul.f32 %v303, %v266
      %v305 = vmul.f32 %v304, %v303
      %v306 = vmul.f32 0.5, %v305
      %v307 = vsub.f32 1.5, %v306
      %v308 = vmul.f32 %v303, %v307
      %v309 = vmul.f32 %v266, %v308
      %vm310 = vcmp.eq.f32.partialorder %v266, inf
      %v311 = vsel %vm310, %v266, %v309
      %vm312 = vcmp.eq.f32.partialorder %v266, 0.0
      %v313 = vand.u32 %v266, 2147483648
      %v314 = vsel %vm312, %v313, %v311
      %v315 = vrsqrt.pop %v278
      %v316 = vmul.f32 %v315, %v278
      %v317 = vmul.f32 %v316, %v315
      %v318 = vmul.f32 0.5, %v317
      %v319 = vsub.f32 1.5, %v318
      %v320 = vmul.f32 %v315, %v319
      %v321 = vmul.f32 %v278, %v320
      %vm322 = vcmp.eq.f32.partialorder %v278, inf
      %v323 = vsel %vm322, %v278, %v321
      %vm324 = vcmp.eq.f32.partialorder %v278, 0.0
      %v325 = vand.u32 %v278, 2147483648
      %v326 = vsel %vm324, %v325, %v323
      %v327 = vadd.f32 %v290, %v302
      %v328 = vadd.f32 %v327, %v314
      %v329 = vadd.f32 %v328, %v326
      %v330 = vrot.slane %v329, 4
      %v331 = vadd.f32 %v329, %v330
      %v332 = vrot.slane %v331, 2
      %v333 = vadd.f32 %v331, %v332
      %v334 = vrot.slane %v333, 1
      %v335 = vadd.f32 %v333, %v334
      %v336 = vadd.f32 %v242, %v254
      %v337 = vadd.f32 %v336, %v266
      %v338 = vadd.f32 %v337, %v278
      %v339 = vrot.slane %v338, 4
      %v340 = vadd.f32 %v338, %v339
      %v341 = vrot.slane %v340, 2
      %v342 = vadd.f32 %v340, %v341
      %v343 = vrot.slane %v342, 1
      %v344 = vadd.f32 %v342, %v343
      %v345 = vadd.f32 %v227, %v228
      %v346 = vadd.f32 %v345, %v229
      %v347 = vadd.f32 %v346, %v230
      %v348 = vrot.slane %v347, 4
      %v349 = vadd.f32 %v347, %v348
      %v350 = vrot.slane %v349, 2
      %v351 = vadd.f32 %v349, %v350
      %v352 = vrot.slane %v351, 1
      %v353 = vadd.f32 %v351, %v352
      %v354 = vld [vmem:[%s205] sm:$0x7]
      %vm355 = vcmask 1040384
      %v356 = vsel %vm355, %v335, %v344
      %vm357 = vcmask 1041408
      %v358 = vsel %vm357, %v356, %v353
      %v359 = vadd.f32 %v354, %v358
      %360 = vst [vmem:[%s205] sm:$0x7] %v359
      %p361 = scmp.lt.s32.totalorder %s17, 3
      %s362 = scalar_select %p361, %s17, 3
      %s363 = smul.addr %s362, 4
      %s364 = scalar_lea.vmem %s2, %s363
      // Predicated region
      $region33: #{_forward_impl.5} parent=27 // pred_check
        %p365 = pneg %p99
      $region34: #{_forward_impl.5} parent=27 // pred_check_branch
        %367 = sbr.rel (%p365) target = $region36
      $region35: #{_forward_impl.5} parent=27 // pred_region
        _
      $region36: #{_forward_impl.5} parent=27 // pred_fallthru
        _
    $region28: #{_forward_impl.5} parent=5 // pred_fallthru
      _
    %p368 = scmp.le.s32.totalorder 2, %s8
    // Predicated region
    $region37: #{_forward_impl.5} parent=5 // pred_check
      %p369 = pneg %p368
    $region38: #{_forward_impl.5} parent=5 // pred_check_branch
      %371 = sbr.rel (%p369) target = $region40
    $region39: #{_forward_impl.5} parent=5 // pred_region
      %s372 = ssub.s32 %s8, 2
      // Predicated region
      $region41: #{_forward_impl.5} parent=39 // pred_check
        %p373 = pneg %p105
      $region42: #{_forward_impl.5} parent=39 // pred_check_branch
        %375 = sbr.rel (%p373) target = $region44
      $region43: #{_forward_impl.5} parent=39 // pred_region
        %p376 = scmp.lt.s32.totalorder %s19, 3
        %s377 = scalar_select %p376, %s19, 3
        %s378 = smul.addr %s377, 4
        %s379 = scalar_lea.vmem %s2, %s378
      $region44: #{_forward_impl.5} parent=39 // pred_fallthru
        _
    $region40: #{_forward_impl.5} parent=5 // pred_fallthru
      _
  $region6: #{_forward_impl.5} parent=0 // loop_footer
    %s12 = sadd.s32 1, %s8
  $region7: #{_forward_impl.5} parent=0 // loop_footer_branch
    %7 = sbr.rel target = $region3
  $region8: #{_forward_impl.5} parent=0 // loop_exit
    _

// kernel: _forward_impl.3
$region0: #{_forward_impl.3}
  #allocation0 [shape = 'u32[]', space=smem, size = 0x4, offset = 0x4, fixed_abs, tag = 'smem constant byte address 0x4 - core index']
  #allocation1 [shape = 'u32[72,128]{1,0:T(1,128)}', space=vmem, size = 0x9000, scoped, tag = 'internal scratch']
  %s0 = inlined_call_operand.vmem [shape: f32[2,16,128], index: 0, kind: input, shape index: {}]
  %s1 = inlined_call_operand.vmem [shape: f32[2,4,128], index: 1, kind: output, shape index: {}]
  %s2 = sld [smem:[#allocation0]]
  $region41: #{_forward_impl.3} parent=0
    _
  %s4 = ssub.s32 1, %s2
  %s5 = scalar_select 0, %s4, %s2
  loop: start=0, step=1, limit=4
  $region2: #{_forward_impl.3} parent=0 // loop_pre_header
    _
  $region3: #{_forward_impl.3} parent=0 // loop_header
    %s7 = sphi 0, %s11
    %p8 = scmp.ge.s32.totalorder %s7, 4
    %s14 = sphi 0, %s26
    %s15 = sphi 0, %s22
    %s16 = sphi 0, %s14
    %s17 = sphi 0, %s15
    %s18 = sphi 0, %s16
    %s19 = sphi 0, %s17
    %s31 = sphi 0, %s33
    %s34 = sphi 0, %s31
    %s35 = sphi 0, %s34
    %s51 = sphi 0, %s35
    %s57 = sphi 0, %s59
    %s60 = sphi 0, %s57
    %s61 = sphi 0, %s60
    %s77 = sphi 0, %s61
  $region4: #{_forward_impl.3} parent=0 // loop_header_branch
    %10 = sbr.rel (%p8) target = $region8
  $region5: #{_forward_impl.3} parent=0 // loop_body
    %s12 = ssub.s32 %s7, 1
    %s13 = ssub.s32 %s7, 2
    %s20 = sadd.s32 1, %s15
    %p21 = scmp.ge.s32.totalorder %s20, 1
    %s22 = scalar_select %p21, 0, %s20
    %s23 = sadd.s32 1, %s14
    %s24 = scalar_select %p21, %s23, %s14
    %p25 = scmp.ge.s32.totalorder %s24, 2
    %s26 = scalar_select %p25, 0, %s24
    %s27 = ssub.s32 %s14, %s26
    %s28 = ssub.s32 %s15, %s22
    %s29 = sor.u32 %s27, %s28
    %p30 = scmp.eq.s32.totalorder %s29, 0
    %s32 = sadd.s32 %s31, 1
    %s33 = scalar_select %p30, %s31, %s32
    %p36 = pneg %p30
    %p37 = scmp.eq.s32.totalorder %s7, 1
    %p38 = por %p36, %p37
    %p39 = scmp.ne.s32.totalorder %s31, %s34
    %p40 = scmp.eq.s32.totalorder %s7, 0
    %p41 = por %p39, %p40
    %p42 = scmp.ne.s32.totalorder %s31, %s34
    %p43 = scmp.eq.s32.totalorder %s12, 1
    %p44 = por %p42, %p43
    %p45 = scmp.ne.s32.totalorder %s34, %s35
    %p46 = scmp.eq.s32.totalorder %s12, 0
    %p47 = por %p45, %p46
    %p48 = scmp.ne.s32.totalorder %s34, %s35
    %p49 = scmp.eq.s32.totalorder %s13, 1
    %p50 = por %p48, %p49
    %p52 = scmp.ne.s32.totalorder %s35, %s51
    %p53 = scmp.eq.s32.totalorder %s13, 0
    %p54 = por %p52, %p53
    %s55 = ssub.s32 %s14, %s26
    %p56 = scmp.eq.s32.totalorder %s55, 0
    %s58 = sadd.s32 %s57, 1
    %s59 = scalar_select %p56, %s57, %s58
    %p62 = pneg %p56
    %p63 = scmp.eq.s32.totalorder %s7, 1
    %p64 = por %p62, %p63
    %p65 = scmp.ne.s32.totalorder %s57, %s60
    %p66 = scmp.eq.s32.totalorder %s7, 0
    %p67 = por %p65, %p66
    %p68 = scmp.ne.s32.totalorder %s57, %s60
    %p69 = scmp.eq.s32.totalorder %s12, 1
    %p70 = por %p68, %p69
    %p71 = scmp.ne.s32.totalorder %s60, %s61
    %p72 = scmp.eq.s32.totalorder %s12, 0
    %p73 = por %p71, %p72
    %p74 = scmp.ne.s32.totalorder %s60, %s61
    %p75 = scmp.eq.s32.totalorder %s13, 1
    %p76 = por %p74, %p75
    %p78 = scmp.ne.s32.totalorder %s61, %s77
    %p79 = scmp.eq.s32.totalorder %s13, 0
    %p80 = por %p78, %p79
    %p81 = scmp.le.s32.totalorder 1, %s7
    %p82 = scmp.lt.s32.totalorder %s7, 3
    %p83 = pnand %p81, %p82
    %p84 = pneg %p83
    // Predicated region
    $region9: #{_forward_impl.3} parent=5 // pred_check
      _
    $region10: #{_forward_impl.3} parent=5 // pred_check_branch
      %86 = sbr.rel (%p83) target = $region12
    $region11: #{_forward_impl.3} parent=5 // pred_region
      %s87 = ssub.s32 %s7, 1
    $region12: #{_forward_impl.3} parent=5 // pred_fallthru
      _
    %p88 = scmp.lt.s32.totalorder %s7, 2
    // Predicated region
    $region13: #{_forward_impl.3} parent=5 // pred_check
      %p89 = pneg %p88
    $region14: #{_forward_impl.3} parent=5 // pred_check_branch
      %91 = sbr.rel (%p89) target = $region16
    $region15: #{_forward_impl.3} parent=5 // pred_region
      // Predicated region
      $region17: #{_forward_impl.3} parent=15 // pred_check
        %p92 = pneg %p41
      $region18: #{_forward_impl.3} parent=15 // pred_check_branch
        %94 = sbr.rel (%p92) target = $region20
      $region19: #{_forward_impl.3} parent=15 // pred_region
        %s95 = smul.u32 2, %s15
        %p96 = scmp.lt.s32.totalorder %s14, 1
        %s97 = scalar_select %p96, %s14, 1
        %p98 = scmp.lt.s32.totalorder %s95, 1
        %s99 = scalar_select %p98, %s95, 1
        %s100 = smul.addr %s97, 2
        %s101 = sadd.s32 %s99, %s100
        %s102 = smul.addr %s101, 8
        %s103 = scalar_lea.vmem %s0, %s102
        %s104 = smul.u32 2, %s15
      $region20: #{_forward_impl.3} parent=15 // pred_fallthru
        _
    $region16: #{_forward_impl.3} parent=5 // pred_fallthru
      _
    %p105 = scmp.le.s32.totalorder 1, %s7
    %p106 = scmp.lt.s32.totalorder %s7, 3
    %p107 = pnand %p105, %p106
    %p108 = pneg %p107
    // Predicated region
    $region21: #{_forward_impl.3} parent=5 // pred_check
      _
    $region22: #{_forward_impl.3} parent=5 // pred_check_branch
      %110 = sbr.rel (%p107) target = $region24
    $region23: #{_forward_impl.3} parent=5 // pred_region
      %s111 = ssub.s32 %s7, 1
      %s112 = smul.u32 2, %s17
      %p113 = scmp.lt.s32.totalorder %s16, 1
      %s114 = scalar_select %p113, %s16, 1
      %p115 = scmp.lt.s32.totalorder %s112, 1
      %s116 = scalar_select %p115, %s112, 1
      %s117 = smul.addr %s114, 2
      %s118 = sadd.s32 %s116, %s117
      %s119 = smul.addr %s118, 8
      %s120 = scalar_lea.vmem %s0, %s119
      %p121 = pneg %p47
      %p122 = pneg %p44
      %p123 = pneg %p73
      %p124 = pneg %p70
      %p125 = scmp.lt.s32.totalorder %s16, 1
      %s126 = scalar_select %p125, %s16, 1
      %s127 = smul.addr %s126, 4
      %s128 = scalar_lea.vmem %s1, %s127
      %s129 = smul.u32 2, %s17
      %p130 = scmp.lt.s32.totalorder %s16, 1
      %s131 = scalar_select %p130, %s16, 1
      %p132 = scmp.lt.s32.totalorder %s129, 1
      %s133 = scalar_select %p132, %s129, 1
      %s134 = smul.addr %s131, 2
      %s135 = sadd.s32 %s133, %s134
      %s136 = smul.addr %s135, 8
      %s137 = scalar_lea.vmem %s0, %s136
      %s138 = smul.u32 2, %s17
      %p139 = scmp.lt.s32.totalorder %s16, 1
      %s140 = scalar_select %p139, %s16, 1
      %s141 = smul.addr %s140, 4
      %s142 = scalar_lea.vmem %s1, %s141
      %p143 = scmp.eq.s32.totalorder %s17, 0
      // Predicated region
      $region25: #{_forward_impl.3} parent=23 // pred_check
        %p144 = pneg %p143
      $region26: #{_forward_impl.3} parent=23 // pred_check_branch
        %146 = sbr.rel (%p144) target = $region28
      $region27: #{_forward_impl.3} parent=23 // pred_region
        %147 = vst [vmem:[%s142] sm:$0xf] 0.0
      $region28: #{_forward_impl.3} parent=23 // pred_fallthru
        _
      %v148 = vld [vmem:[%s137] sm:$0xff]
      %v149 = vld [vmem:[%s137 + $0x8] sm:$0xff]
      %vm150 = vcmp.ne.f32.partialorder %v148, %v148
      %vm151 = vcmp.ne.f32.partialorder %v149, %v149
      %vm152 = vmxor %vm150, 1
      %vm153 = vmxor %vm151, 1
      %v154 = vsel %vm152, %v148, 0.0
      %v155 = vsel %vm153, %v149, 0.0
      %v156 = vmul.f32 %v154, %v154
      %v157 = vmul.f32 %v155, %v155
      %v158 = vrsqrt.pop %v156
      %v159 = vmul.f32 %v158, %v156
      %v160 = vmul.f32 %v159, %v158
      %v161 = vmul.f32 0.5, %v160
      %v162 = vsub.f32 1.5, %v161
      %v163 = vmul.f32 %v158, %v162
      %v164 = vmul.f32 %v156, %v163
      %vm165 = vcmp.eq.f32.partialorder %v156, inf
      %v166 = vsel %vm165, %v156, %v164
      %vm167 = vcmp.eq.f32.partialorder %v156, 0.0
      %v168 = vand.u32 %v156, 2147483648
      %v169 = vsel %vm167, %v168, %v166
      %v170 = vrsqrt.pop %v157
      %v171 = vmul.f32 %v170, %v157
      %v172 = vmul.f32 %v171, %v170
      %v173 = vmul.f32 0.5, %v172
      %v174 = vsub.f32 1.5, %v173
      %v175 = vmul.f32 %v170, %v174
      %v176 = vmul.f32 %v157, %v175
      %vm177 = vcmp.eq.f32.partialorder %v157, inf
      %v178 = vsel %vm177, %v157, %v176
      %vm179 = vcmp.eq.f32.partialorder %v157, 0.0
      %v180 = vand.u32 %v157, 2147483648
      %v181 = vsel %vm179, %v180, %v178
      %v182 = vrsqrt.pop %v169
      %v183 = vmul.f32 %v182, %v169
      %v184 = vmul.f32 %v183, %v182
      %v185 = vmul.f32 0.5, %v184
      %v186 = vsub.f32 1.5, %v185
      %v187 = vmul.f32 %v182, %v186
      %v188 = vmul.f32 %v169, %v187
      %vm189 = vcmp.eq.f32.partialorder %v169, inf
      %v190 = vsel %vm189, %v169, %v188
      %vm191 = vcmp.eq.f32.partialorder %v169, 0.0
      %v192 = vand.u32 %v169, 2147483648
      %v193 = vsel %vm191, %v192, %v190
      %v194 = vrsqrt.pop %v181
      %v195 = vmul.f32 %v194, %v181
      %v196 = vmul.f32 %v195, %v194
      %v197 = vmul.f32 0.5, %v196
      %v198 = vsub.f32 1.5, %v197
      %v199 = vmul.f32 %v194, %v198
      %v200 = vmul.f32 %v181, %v199
      %vm201 = vcmp.eq.f32.partialorder %v181, inf
      %v202 = vsel %vm201, %v181, %v200
      %vm203 = vcmp.eq.f32.partialorder %v181, 0.0
      %v204 = vand.u32 %v181, 2147483648
      %v205 = vsel %vm203, %v204, %v202
      %v206 = vadd.f32 %v193, %v205
      %v207 = vrot.slane %v206, 4
      %v208 = vadd.f32 %v206, %v207
      %v209 = vrot.slane %v208, 2
      %v210 = vadd.f32 %v208, %v209
      %v211 = vrot.slane %v210, 1
      %v212 = vadd.f32 %v210, %v211
      %v213 = vadd.f32 %v169, %v181
      %v214 = vrot.slane %v213, 4
      %v215 = vadd.f32 %v213, %v214
      %v216 = vrot.slane %v215, 2
      %v217 = vadd.f32 %v215, %v216
      %v218 = vrot.slane %v217, 1
      %v219 = vadd.f32 %v217, %v218
      %v220 = vadd.f32 %v156, %v157
      %v221 = vrot.slane %v220, 4
      %v222 = vadd.f32 %v220, %v221
      %v223 = vrot.slane %v222, 2
      %v224 = vadd.f32 %v222, %v223
      %v225 = vrot.slane %v224, 1
      %v226 = vadd.f32 %v224, %v225
      %v227 = vsel %vm152, 1, 0
      %v228 = vsel %vm153, 1, 0
      %v229 = vcvt.s32.f32 %v227
      %v230 = vcvt.s32.f32 %v228
      %v231 = vadd.f32 %v229, %v230
      %v232 = vrot.slane %v231, 4
      %v233 = vadd.f32 %v231, %v232
      %v234 = vrot.slane %v233, 2
      %v235 = vadd.f32 %v233, %v234
      %v236 = vrot.slane %v235, 1
      %v237 = vadd.f32 %v235, %v236
      %v238 = vld [vmem:[%s142] sm:$0xf]
      %vm239 = vcmask 1040384
      %v240 = vsel %vm239, %v212, %v219
      %vm241 = vcmask 1041408
      %v242 = vsel %vm241, %v240, %v226
      %vm243 = vcmask 1042432
      %v244 = vsel %vm243, %v242, %v237
      %v245 = vadd.f32 %v238, %v244
      %246 = vst [vmem:[%s142] sm:$0xf] %v245
      %p247 = scmp.lt.s32.totalorder %s16, 1
      %s248 = scalar_select %p247, %s16, 1
      %s249 = smul.addr %s248, 4
      %s250 = scalar_lea.vmem %s1, %s249
      // Predicated region
      $region29: #{_forward_impl.3} parent=23 // pred_check
        %p251 = pneg %p70
      $region30: #{_forward_impl.3} parent=23 // pred_check_branch
        %253 = sbr.rel (%p251) target = $region32
      $region31: #{_forward_impl.3} parent=23 // pred_region
        _
      $region32: #{_forward_impl.3} parent=23 // pred_fallthru
        _
    $region24: #{_forward_impl.3} parent=5 // pred_fallthru
      _
    %p254 = scmp.le.s32.totalorder 2, %s7
    // Predicated region
    $region33: #{_forward_impl.3} parent=5 // pred_check
      %p255 = pneg %p254
    $region34: #{_forward_impl.3} parent=5 // pred_check_branch
      %257 = sbr.rel (%p255) target = $region36
    $region35: #{_forward_impl.3} parent=5 // pred_region
      %s258 = ssub.s32 %s7, 2
      // Predicated region
      $region37: #{_forward_impl.3} parent=35 // pred_check
        %p259 = pneg %p76
      $region38: #{_forward_impl.3} parent=35 // pred_check_branch
        %261 = sbr.rel (%p259) target = $region40
      $region39: #{_forward_impl.3} parent=35 // pred_region
        %p262 = scmp.lt.s32.totalorder %s18, 1
        %s263 = scalar_select %p262, %s18, 1
        %s264 = smul.addr %s263, 4
        %s265 = scalar_lea.vmem %s1, %s264
      $region40: #{_forward_impl.3} parent=35 // pred_fallthru
        _
    $region36: #{_forward_impl.3} parent=5 // pred_fallthru
      _
  $region6: #{_forward_impl.3} parent=0 // loop_footer
    %s11 = sadd.s32 1, %s7
  $region7: #{_forward_impl.3} parent=0 // loop_footer_branch
    %6 = sbr.rel target = $region3
  $region8: #{_forward_impl.3} parent=0 // loop_exit
    _

</llo_original>
